<compile_context>
chip_gen: v5e
topology: v5e:2x2
jax: 0.10.0
libtpu: 0.0.40
codegen_flags: <defaults>
</compile_context>

<pallas_src>
import math

import jax
import jax.numpy as jnp
from jax import lax
from jax.experimental import pallas as pl
from jax.experimental.pallas import tpu as pltpu

_BLOCK_B = 128  # batch-tile rows per grid step (fills MXU M on v6e/v7x)


def _round_up(n, m):
    return ((n + m - 1) // m) * m


def _leaky(z, slope=0.2):
    # LeakyReLU(0.2) as mul+max (2 VPU ops) instead of cmp+mul+select (3 ops).
    return jnp.maximum(z, slope * z)


def make_kernel(out_size, S):
    """S = slab height (rows per packed hidden-layer weight, multiple of 8)."""

    def discriminator_kernel(pr_ref, pg_ref, w1_ref, rest_ref, out_ref):
        f32 = jnp.float32
        w1 = w1_ref[...]                                    # (in_size, 128): [w11 | w12 | 0...]

        # fc1_1 / fc1_2 share the lane-packed weight -> two MXU dots with K = in_size
        # (half the K of a block-diagonal fusion); the lane-iota select realises the
        # torch.cat([x, y]) for free.
        xb = jnp.dot(pr_ref[...], w1, preferred_element_type=f32)      # (Bt, 128)
        yb = jnp.dot(pg_ref[...], w1, preferred_element_type=f32)      # (Bt, 128)
        lane = lax.broadcasted_iota(jnp.int32, xb.shape, 1)
        # fused bias row [b11 | b12 | 1 @ lane 2*out_size]; the 1 seeds the constant
        # lane used for bias folding in every later layer (leaky(1) == 1).
        h = _leaky(jnp.where(lane < out_size, xb, yb) + rest_ref[0:1, :])   # (Bt, 128)

        # static, 8-row-aligned slices of the single packed hidden-layer blob
        w2t = rest_ref[8:8 + S, :]                  # W2^T, b2 folded into lane 2*out_size
        w3 = rest_ref[8 + S:8 + 2 * S, :]           # W3,   b3 folded as an extra row
        w4t = rest_ref[8 + 2 * S:8 + 3 * S, :]      # W4^T, b4 folded into lane out_size
        w5 = rest_ref[8 + 3 * S:8 + 4 * S, :]       # W5,   b5 folded as an extra row

        c = _leaky(jnp.dot(h, w2t.T, preferred_element_type=f32))      # (Bt, S)
        h = _leaky(jnp.dot(c, w3, preferred_element_type=f32))         # (Bt, 128)
        c = _leaky(jnp.dot(h, w4t.T, preferred_element_type=f32))      # (Bt, S)
        out_ref[...] = jnp.dot(c, w5, preferred_element_type=f32)      # (Bt, 128) lane-dense

    return discriminator_kernel


def init_params(key, in_size, dtype=jnp.float32):
    """Synthetic parameters in 'math' layout: weights (in_feat, out_feat), biases (out_feat,)."""
    out_size = int(math.log2(in_size))
    out_half = out_size // 2
    shapes = {
        "w11": (in_size, out_size), "b11": (out_size,),
        "w12": (in_size, out_size), "b12": (out_size,),
        "w2": (2 * out_size, out_size), "b2": (out_size,),
        "w3": (out_size, out_size), "b3": (out_size,),
        "w4": (out_size, out_size), "b4": (out_size,),
        "w5": (out_size, out_half), "b5": (out_half,),
    }
    params = {}
    for name, shape in shapes.items():
        key, sub = jax.random.split(key)
        scale = 0.02 if name.startswith("w") else 0.1   # nonzero biases exercise bias folding
        params[name] = (scale * jax.random.normal(sub, shape)).astype(dtype)
    return params, out_size, out_half


def pack_params(params, in_size, out_size, out_half):
    """Pack all 12 parameter arrays into 2 lane-dense f32 blobs (w1, rest)."""
    two = 2 * out_size
    assert two + 1 <= 128 and out_size >= 2
    S = ((out_size + 1 + 7) // 8) * 8   # slab rows per hidden weight
    f32 = jnp.float32

    # shared fc1 weight: lanes [0:out_size)=w11, [out_size:two)=w12 (halves K vs block-diag)
    w1 = jnp.zeros((in_size, 128), f32)
    w1 = w1.at[:, :out_size].set(params["w11"].astype(f32))
    w1 = w1.at[:, out_size:two].set(params["w12"].astype(f32))

    rest = jnp.zeros((8 + 4 * S, 128), f32)
    # row 0: fused fc1 bias [b11|b12]; lane `two` carries the constant 1 used downstream.
    rest = rest.at[0, :out_size].set(params["b11"].astype(f32))
    rest = rest.at[0, out_size:two].set(params["b12"].astype(f32))
    rest = rest.at[0, two].set(1.0)

    r = 8
    # layer 2: W2^T with bias in lane `two`; extra row regenerates the constant 1
    rest = rest.at[r:r + out_size, :two].set(params["w2"].T.astype(f32))
    rest = rest.at[r:r + out_size, two].set(params["b2"].astype(f32))
    rest = rest.at[r + out_size, two].set(1.0)
    r += S
    # layer 3: W3 with bias as an extra row; passthrough keeps constant at lane out_size
    rest = rest.at[r:r + out_size, :out_size].set(params["w3"].astype(f32))
    rest = rest.at[r + out_size, :out_size].set(params["b3"].astype(f32))
    rest = rest.at[r + out_size, out_size].set(1.0)
    r += S
    # layer 4: W4^T with bias in lane `out_size`; extra row regenerates the constant 1
    rest = rest.at[r:r + out_size, :out_size].set(params["w4"].T.astype(f32))
    rest = rest.at[r:r + out_size, out_size].set(params["b4"].astype(f32))
    rest = rest.at[r + out_size, out_size].set(1.0)
    r += S
    # layer 5 (final, no activation): W5 with bias as an extra row
    rest = rest.at[r:r + out_size, :out_half].set(params["w5"].astype(f32))
    rest = rest.at[r + out_size, :out_half].set(params["b5"].astype(f32))

    return w1, rest, S


def make_discriminator(params, in_size, block_b=_BLOCK_B):
    out_size = int(math.log2(in_size))
    out_half = out_size // 2
    w1, rest, S = pack_params(params, in_size, out_size, out_half)
    kernel = make_kernel(out_size, S)
    rest_rows = 8 + 4 * S

    @jax.jit
    def apply(P_real, P_gen):
        """Accepts (in_size,) (module semantics) or (B, in_size) batched inputs."""
        squeeze = P_real.ndim == 1
        pr = jnp.atleast_2d(P_real).astype(jnp.float32)
        pg = jnp.atleast_2d(P_gen).astype(jnp.float32)
        B = pr.shape[0]
        bt = block_b if B >= block_b else _round_up(B, 8)
        b_pad = _round_up(B, bt)
        if b_pad != B:
            pr = jnp.pad(pr, ((0, b_pad - B), (0, 0)))
            pg = jnp.pad(pg, ((0, b_pad - B), (0, 0)))

        flops = 4 * b_pad * in_size * 128 + 8 * b_pad * 128 * S
        bytes_accessed = 4 * (2 * b_pad * in_size + in_size * 128
                              + rest_rows * 128 + b_pad * 128)

        out = pl.pallas_call(
            kernel,
            out_shape=jax.ShapeDtypeStruct((b_pad, 128), jnp.float32),  # lane-dense output
            grid_spec=pltpu.PrefetchScalarGridSpec(
                num_scalar_prefetch=0,
                grid=(b_pad // bt,),
                in_specs=[
                    pl.BlockSpec((bt, in_size), lambda b: (b, 0)),
                    pl.BlockSpec((bt, in_size), lambda b: (b, 0)),
                    # constant index maps -> weights DMA'd once, VMEM-resident across steps
                    pl.BlockSpec((in_size, 128), lambda b: (0, 0)),
                    pl.BlockSpec((rest_rows, 128), lambda b: (0, 0)),
                ],
                out_specs=pl.BlockSpec((bt, 128), lambda b: (b, 0)),
            ),
            compiler_params=pltpu.CompilerParams(
                dimension_semantics=("parallel",)),
            cost_estimate=pl.CostEstimate(
                flops=flops, transcendentals=0, bytes_accessed=bytes_accessed),
        )(pr, pg, w1, rest)

        out = out[:B, :out_half]
        return out[0] if squeeze else out

    return apply


def reference_forward(P_real, P_gen, params):
    leaky = lambda z: jnp.where(z >= 0, z, 0.2 * z)
    x = leaky(P_real @ params["w11"] + params["b11"])
    y = leaky(P_gen @ params["w12"] + params["b12"])
    h = jnp.concatenate([x, y], axis=0)
    h = leaky(h @ params["w2"] + params["b2"])
    h = leaky(h @ params["w3"] + params["b3"])
    h = leaky(h @ params["w4"] + params["b4"])
    return h @ params["w5"] + params["b5"]


if __name__ == "__main__":
    in_size = 256                      # out_size = 8, final output dim = 4
    key = jax.random.PRNGKey(0)
    k_params, k_real, k_gen, k_breal, k_bgen = jax.random.split(key, 5)

    params, out_size, out_half = init_params(k_params, in_size)
    apply_fn = make_discriminator(params, in_size)

    # 1) single-sample call — matches the PyTorch module's 1-D forward exactly
    P_real = jax.random.uniform(k_real, (in_size,), dtype=jnp.float32)
    P_gen = jax.random.uniform(k_gen, (in_size,), dtype=jnp.float32)
    out1 = jax.block_until_ready(apply_fn(P_real, P_gen))
    ref1 = reference_forward(P_real, P_gen, params)
    assert out1.shape == (out_half,)
    assert jnp.allclose(out1, ref1, atol=5e-4, rtol=5e-4), (out1, ref1)

    # 2) small batched call (per-sample semantics; amortizes weight DMA / launch overhead)
    B = 16
    PR = jax.random.uniform(k_breal, (B, in_size), dtype=jnp.float32)
    PG = jax.random.uniform(k_bgen, (B, in_size), dtype=jnp.float32)
    outB = jax.block_until_ready(apply_fn(PR, PG))
    refB = jax.vmap(lambda a, b: reference_forward(a, b, params))(PR, PG)
    assert outB.shape == (B, out_half)
    assert jnp.allclose(outB, refB, atol=5e-4, rtol=5e-4), (outB, refB)

    print("KERNEL_OK")
</pallas_src>

<mosaic_0001>
module attributes {stable_mosaic.version = 11 : i64} {
  func.func @discriminator_kernel(%arg0: i32, %arg1: memref<8x256xf32, #tpu.memory_space<vmem>>, %arg2: memref<8x256xf32, #tpu.memory_space<vmem>>, %arg3: memref<256x128xf32, #tpu.memory_space<vmem>>, %arg4: memref<72x128xf32, #tpu.memory_space<vmem>>, %arg5: memref<8x128xf32, #tpu.memory_space<vmem>>) attributes {dimension_semantics = [#tpu.dimension_semantics<parallel>], iteration_bounds = array<i64: 1>, scalar_prefetch = 0 : i64, scratch_operands = 0 : i64, tpu.core_type = #tpu.core_type<tc>, window_params = [{transform_indices = @transform_0, window_bounds = array<i64: 8, 256>}, {transform_indices = @transform_1, window_bounds = array<i64: 8, 256>}, {pipeline_mode = #tpu.pipeline_mode<synchronous>, transform_indices = @transform_2, window_bounds = array<i64: 256, 128>}, {pipeline_mode = #tpu.pipeline_mode<synchronous>, transform_indices = @transform_3, window_bounds = array<i64: 72, 128>}, {transform_indices = @transform_4, window_bounds = array<i64: 8, 128>}]} {
    %c0 = arith.constant 0 : index
    %c0_0 = arith.constant 0 : index
    %0 = vector.load %arg3[%c0, %c0_0] : memref<256x128xf32, #tpu.memory_space<vmem>>, vector<256x128xf32>
    %c0_1 = arith.constant 0 : index
    %c0_2 = arith.constant 0 : index
    %1 = vector.load %arg1[%c0_1, %c0_2] : memref<8x256xf32, #tpu.memory_space<vmem>>, vector<8x256xf32>
    %cst = arith.constant dense<0.000000e+00> : vector<8x128xf32>
    %2 = tpu.matmul %1, %0, %cst {dimension_numbers = #tpu.dot_dimension_numbers<[1], [0], [0], [1], [0, 0, 1, 1], [], []>} : vector<8x256xf32>, vector<256x128xf32>, vector<8x128xf32> -> vector<8x128xf32>
    %c0_3 = arith.constant 0 : index
    %c0_4 = arith.constant 0 : index
    %3 = vector.load %arg2[%c0_3, %c0_4] : memref<8x256xf32, #tpu.memory_space<vmem>>, vector<8x256xf32>
    %cst_5 = arith.constant dense<0.000000e+00> : vector<8x128xf32>
    %4 = tpu.matmul %3, %0, %cst_5 {dimension_numbers = #tpu.dot_dimension_numbers<[1], [0], [0], [1], [0, 0, 1, 1], [], []>} : vector<8x256xf32>, vector<256x128xf32>, vector<8x128xf32> -> vector<8x128xf32>
    %5 = tpu.iota {dimensions = array<i32: 1>} : vector<8x128xi32>
    %c8_i32 = arith.constant 8 : i32
    %6 = vector.broadcast %c8_i32 : i32 to vector<8x128xi32>
    %7 = arith.cmpi slt, %5, %6 : vector<8x128xi32>
    %8 = arith.select %7, %2, %4 : vector<8x128xi1>, vector<8x128xf32>
    %c0_6 = arith.constant 0 : index
    %c0_7 = arith.constant 0 : index
    %9 = vector.load %arg4[%c0_6, %c0_7] : memref<72x128xf32, #tpu.memory_space<vmem>>, vector<1x128xf32>
    %10 = vector.broadcast %9 : vector<1x128xf32> to vector<8x128xf32>
    %11 = arith.addf %8, %10 : vector<8x128xf32>
    %cst_8 = arith.constant 2.000000e-01 : f32
    %12 = vector.broadcast %cst_8 : f32 to vector<8x128xf32>
    %13 = arith.mulf %12, %11 : vector<8x128xf32>
    %14 = arith.maximumf %11, %13 : vector<8x128xf32>
    %c8 = arith.constant 8 : index
    %c0_9 = arith.constant 0 : index
    %15 = vector.load %arg4[%c8, %c0_9] : memref<72x128xf32, #tpu.memory_space<vmem>>, vector<16x128xf32>
    %c24 = arith.constant 24 : index
    %c0_10 = arith.constant 0 : index
    %16 = vector.load %arg4[%c24, %c0_10] : memref<72x128xf32, #tpu.memory_space<vmem>>, vector<16x128xf32>
    %c40 = arith.constant 40 : index
    %c0_11 = arith.constant 0 : index
    %17 = vector.load %arg4[%c40, %c0_11] : memref<72x128xf32, #tpu.memory_space<vmem>>, vector<16x128xf32>
    %c56 = arith.constant 56 : index
    %c0_12 = arith.constant 0 : index
    %18 = vector.load %arg4[%c56, %c0_12] : memref<72x128xf32, #tpu.memory_space<vmem>>, vector<16x128xf32>
    %19 = tpu.transpose %15, [1, 0] : vector<16x128xf32> -> vector<128x16xf32>
    %cst_13 = arith.constant dense<0.000000e+00> : vector<8x16xf32>
    %20 = tpu.matmul %14, %19, %cst_13 {dimension_numbers = #tpu.dot_dimension_numbers<[1], [0], [0], [1], [0, 0, 1, 1], [], []>} : vector<8x128xf32>, vector<128x16xf32>, vector<8x16xf32> -> vector<8x16xf32>
    %cst_14 = arith.constant 2.000000e-01 : f32
    %21 = vector.broadcast %cst_14 : f32 to vector<8x16xf32>
    %22 = arith.mulf %21, %20 : vector<8x16xf32>
    %23 = arith.maximumf %20, %22 : vector<8x16xf32>
    %cst_15 = arith.constant dense<0.000000e+00> : vector<8x128xf32>
    %24 = tpu.matmul %23, %16, %cst_15 {dimension_numbers = #tpu.dot_dimension_numbers<[1], [0], [0], [1], [0, 0, 1, 1], [], []>} : vector<8x16xf32>, vector<16x128xf32>, vector<8x128xf32> -> vector<8x128xf32>
    %cst_16 = arith.constant 2.000000e-01 : f32
    %25 = vector.broadcast %cst_16 : f32 to vector<8x128xf32>
    %26 = arith.mulf %25, %24 : vector<8x128xf32>
    %27 = arith.maximumf %24, %26 : vector<8x128xf32>
    %28 = tpu.transpose %17, [1, 0] : vector<16x128xf32> -> vector<128x16xf32>
    %cst_17 = arith.constant dense<0.000000e+00> : vector<8x16xf32>
    %29 = tpu.matmul %27, %28, %cst_17 {dimension_numbers = #tpu.dot_dimension_numbers<[1], [0], [0], [1], [0, 0, 1, 1], [], []>} : vector<8x128xf32>, vector<128x16xf32>, vector<8x16xf32> -> vector<8x16xf32>
    %cst_18 = arith.constant 2.000000e-01 : f32
    %30 = vector.broadcast %cst_18 : f32 to vector<8x16xf32>
    %31 = arith.mulf %30, %29 : vector<8x16xf32>
    %32 = arith.maximumf %29, %31 : vector<8x16xf32>
    %cst_19 = arith.constant dense<0.000000e+00> : vector<8x128xf32>
    %33 = tpu.matmul %32, %18, %cst_19 {dimension_numbers = #tpu.dot_dimension_numbers<[1], [0], [0], [1], [0, 0, 1, 1], [], []>} : vector<8x16xf32>, vector<16x128xf32>, vector<8x128xf32> -> vector<8x128xf32>
    %c0_20 = arith.constant 0 : index
    %c0_21 = arith.constant 0 : index
    %34 = vector.load %arg5[%c0_20, %c0_21] : memref<8x128xf32, #tpu.memory_space<vmem>>, vector<8x128xf32>
    tpu.vector_store %arg5[%c0_20, %c0_21], %33 {strides = array<i32>} : memref<8x128xf32, #tpu.memory_space<vmem>>, vector<8x128xf32>,
    return
  }
  func.func @transform_0(%arg0: i32) -> (i32, i32) {
    %c0_i32 = arith.constant 0 : i32
    %c0_i32_0 = arith.constant 0 : i32
    return %arg0, %c0_i32 : i32, i32
  }
  func.func @transform_1(%arg0: i32) -> (i32, i32) {
    %c0_i32 = arith.constant 0 : i32
    %c0_i32_0 = arith.constant 0 : i32
    return %arg0, %c0_i32 : i32, i32
  }
  func.func @transform_2(%arg0: i32) -> (i32, i32) {
    %c0_i32 = arith.constant 0 : i32
    %c0_i32_0 = arith.constant 0 : i32
    %c0_i32_1 = arith.constant 0 : i32
    return %c0_i32, %c0_i32_0 : i32, i32
  }
  func.func @transform_3(%arg0: i32) -> (i32, i32) {
    %c0_i32 = arith.constant 0 : i32
    %c0_i32_0 = arith.constant 0 : i32
    %c0_i32_1 = arith.constant 0 : i32
    return %c0_i32, %c0_i32_0 : i32, i32
  }
  func.func @transform_4(%arg0: i32) -> (i32, i32) {
    %c0_i32 = arith.constant 0 : i32
    %c0_i32_0 = arith.constant 0 : i32
    return %arg0, %c0_i32 : i32, i32
  }
}

</mosaic_0001>

<llo_original>
// kernel: apply.1
$region0: #{apply.1}
  #allocation0 [shape = 'u32[]', space=smem, size = 0x4, offset = 0x4, fixed_abs, tag = 'smem constant byte address 0x4 - core index']
  #allocation1 [shape = 'u32[72,128]{1,0:T(1,128)}', space=vmem, size = 0x9000, scoped, tag = 'internal scratch']
  %s0 = inlined_call_operand.vmem [shape: f32[8,256], index: 0, kind: input, shape index: {}]
  %s1 = inlined_call_operand.vmem [shape: f32[8,256], index: 1, kind: input, shape index: {}]
  %s2 = inlined_call_operand.hbm [shape: f32[256,128], index: 2, kind: input, shape index: {}]
  %s3 = inlined_call_operand.hbm [shape: f32[72,128], index: 3, kind: input, shape index: {}]
  %s4 = inlined_call_operand.vmem [shape: f32[8,128], index: 4, kind: output, shape index: {}]
  %s5 = sld [smem:[#allocation0]]
  $region34: #{apply.1} parent=0
    _
  %s7 = ssub.s32 1, %s5
  %s8 = scalar_select 0, %s7, %s5
  $region1: #{apply.1} parent=0
    #allocation2 [shape = 'u8[131072]{0}', space=vmem, size = 0x20000, scoped, tag = 'input window, operand 2, single buffered']
    #allocation3 [shape = 's32[1]{0}', space=sflag, size = 0x4, scoped, tag = 'scoped memory for apply.1']
    #allocation4 [shape = 'u8[36864]{0}', space=vmem, size = 0x9000, scoped, tag = 'input window, operand 3, single buffered']
    #allocation5 [shape = 's32[1]{0}', space=sflag, size = 0x4, scoped, tag = 'scoped memory for apply.1']
    %9 = vsyncpa [#allocation3], 0
    %10 = vsyncpa [#allocation5], 0
    // Predicated region
    $region2: #{apply.1} parent=1 // pred_check
      _
    $region3: #{apply.1} parent=1 // pred_check_branch
      %12 = sbr.rel (0) target = $region5
    $region4: #{apply.1} parent=1 // pred_region
      _
    $region5: #{apply.1} parent=1 // pred_fallthru
      _
    // Predicated region
    $region6: #{apply.1} parent=1 // pred_check
      _
    $region7: #{apply.1} parent=1 // pred_check_branch
      %14 = sbr.rel (0) target = $region9
    $region8: #{apply.1} parent=1 // pred_region
      _
    $region9: #{apply.1} parent=1 // pred_fallthru
      _
    // Predicated region
    $region10: #{apply.1} parent=1 // pred_check
      _
    $region11: #{apply.1} parent=1 // pred_check_branch
      %16 = sbr.rel (0) target = $region13
    $region12: #{apply.1} parent=1 // pred_region
      %18 = vsyncadd [#allocation3], 0
      %s19 = sshll.u32 %s2, 4
      %s20 = int_to_ptr.hbm [resolvable:$true] %s19
      %s21 = sshll.u32 [#allocation2], 4
      %s22 = int_to_ptr.vmem [resolvable:$true] %s21
      %27 = dma.hbm_to_vmem [thread:$0]  %s20, 4096, %s22, [#allocation3], 128, 128, 8
    $region13: #{apply.1} parent=1 // pred_fallthru
      _
    // Predicated region
    $region14: #{apply.1} parent=1 // pred_check
      _
    $region15: #{apply.1} parent=1 // pred_check_branch
      %29 = sbr.rel (0) target = $region17
    $region16: #{apply.1} parent=1 // pred_region
      %31 = vsyncadd [#allocation5], 0
      %s32 = sshll.u32 %s3, 4
      %s33 = int_to_ptr.hbm [resolvable:$true] %s32
      %s34 = sshll.u32 [#allocation4], 4
      %s35 = int_to_ptr.vmem [resolvable:$true] %s34
      %40 = dma.hbm_to_vmem [thread:$0]  %s33, 1152, %s35, [#allocation5], 128, 128, 8
    $region17: #{apply.1} parent=1 // pred_fallthru
      _
    // Predicated region
    $region18: #{apply.1} parent=1 // pred_check
      _
    $region19: #{apply.1} parent=1 // pred_check_branch
      %42 = sbr.rel (0) target = $region21
    $region20: #{apply.1} parent=1 // pred_region
      %44 = dma.done [#allocation3], 4096
    $region21: #{apply.1} parent=1 // pred_fallthru
      _
    // Predicated region
    $region22: #{apply.1} parent=1 // pred_check
      _
    $region23: #{apply.1} parent=1 // pred_check_branch
      %46 = sbr.rel (0) target = $region25
    $region24: #{apply.1} parent=1 // pred_region
      %48 = dma.done [#allocation5], 1152
    $region25: #{apply.1} parent=1 // pred_fallthru
      _
    %v49 = vld [vmem:[#allocation2] sm:$0xff]
    %v50 = vld [vmem:[#allocation2 + $0x8] sm:$0xff]
    %v51 = vld [vmem:[#allocation2 + $0x10] sm:$0xff]
    %v52 = vld [vmem:[#allocation2 + $0x18] sm:$0xff]
    %v53 = vld [vmem:[#allocation2 + $0x20] sm:$0xff]
    %v54 = vld [vmem:[#allocation2 + $0x28] sm:$0xff]
    %v55 = vld [vmem:[#allocation2 + $0x30] sm:$0xff]
    %v56 = vld [vmem:[#allocation2 + $0x38] sm:$0xff]
    %v57 = vld [vmem:[#allocation2 + $0x40] sm:$0xff]
    %v58 = vld [vmem:[#allocation2 + $0x48] sm:$0xff]
    %v59 = vld [vmem:[#allocation2 + $0x50] sm:$0xff]
    %v60 = vld [vmem:[#allocation2 + $0x58] sm:$0xff]
    %v61 = vld [vmem:[#allocation2 + $0x60] sm:$0xff]
    %v62 = vld [vmem:[#allocation2 + $0x68] sm:$0xff]
    %v63 = vld [vmem:[#allocation2 + $0x70] sm:$0xff]
    %v64 = vld [vmem:[#allocation2 + $0x78] sm:$0xff]
    %v65 = vld [vmem:[#allocation2 + $0x80] sm:$0xff]
    %v66 = vld [vmem:[#allocation2 + $0x88] sm:$0xff]
    %v67 = vld [vmem:[#allocation2 + $0x90] sm:$0xff]
    %v68 = vld [vmem:[#allocation2 + $0x98] sm:$0xff]
    %v69 = vld [vmem:[#allocation2 + $0xa0] sm:$0xff]
    %v70 = vld [vmem:[#allocation2 + $0xa8] sm:$0xff]
    %v71 = vld [vmem:[#allocation2 + $0xb0] sm:$0xff]
    %v72 = vld [vmem:[#allocation2 + $0xb8] sm:$0xff]
    %v73 = vld [vmem:[#allocation2 + $0xc0] sm:$0xff]
    %v74 = vld [vmem:[#allocation2 + $0xc8] sm:$0xff]
    %v75 = vld [vmem:[#allocation2 + $0xd0] sm:$0xff]
    %v76 = vld [vmem:[#allocation2 + $0xd8] sm:$0xff]
    %v77 = vld [vmem:[#allocation2 + $0xe0] sm:$0xff]
    %v78 = vld [vmem:[#allocation2 + $0xe8] sm:$0xff]
    %v79 = vld [vmem:[#allocation2 + $0xf0] sm:$0xff]
    %v80 = vld [vmem:[#allocation2 + $0xf8] sm:$0xff]
    %v81 = vld [vmem:[%s0] sm:$0xff]
    %v82 = vld [vmem:[%s0 + $0x8] sm:$0xff]
    %83 = vmatpush.msra.mxu0 %v64
    %84 = vmatpush.msra.mxu0 %v63
    %85 = vmatpush.msra.mxu0 %v62
    %86 = vmatpush.msra.mxu0 %v61
    %87 = vmatpush.msra.mxu0 %v60
    %88 = vmatpush.msra.mxu0 %v59
    %89 = vmatpush.msra.mxu0 %v58
    %90 = vmatpush.msra.mxu0 %v57
    %91 = vmatpush.msra.mxu0 %v56
    %92 = vmatpush.msra.mxu0 %v55
    %93 = vmatpush.msra.mxu0 %v54
    %94 = vmatpush.msra.mxu0 %v53
    %95 = vmatpush.msra.mxu0 %v52
    %96 = vmatpush.msra.mxu0 %v51
    %97 = vmatpush.msra.mxu0 %v50
    %98 = vmatpush.msra.mxu0 %v49
    %99 = vmatmul.f32.gmra.mxu0 %v81
    %v100 = vpop.f32.mrf.mxu0
    %v101 = vadd.f32 0.0, %v100
    %102 = vdwg.mxu0
    %103 = vmatpush.msra.mxu0 %v80
    %104 = vmatpush.msra.mxu0 %v79
    %105 = vmatpush.msra.mxu0 %v78
    %106 = vmatpush.msra.mxu0 %v77
    %107 = vmatpush.msra.mxu0 %v76
    %108 = vmatpush.msra.mxu0 %v75
    %109 = vmatpush.msra.mxu0 %v74
    %110 = vmatpush.msra.mxu0 %v73
    %111 = vmatpush.msra.mxu0 %v72
    %112 = vmatpush.msra.mxu0 %v71
    %113 = vmatpush.msra.mxu0 %v70
    %114 = vmatpush.msra.mxu0 %v69
    %115 = vmatpush.msra.mxu0 %v68
    %116 = vmatpush.msra.mxu0 %v67
    %117 = vmatpush.msra.mxu0 %v66
    %118 = vmatpush.msra.mxu0 %v65
    %119 = vmatmul.f32.gmra.mxu0 %v82
    %v120 = vpop.f32.mrf.mxu0
    %v121 = vadd.f32 %v101, %v120
    %122 = vdwg.mxu0
    %v123 = vld [vmem:[%s1] sm:$0xff]
    %v124 = vld [vmem:[%s1 + $0x8] sm:$0xff]
    %125 = vmatpush.msra.mxu0 %v64
    %126 = vmatpush.msra.mxu0 %v63
    %127 = vmatpush.msra.mxu0 %v62
    %128 = vmatpush.msra.mxu0 %v61
    %129 = vmatpush.msra.mxu0 %v60
    %130 = vmatpush.msra.mxu0 %v59
    %131 = vmatpush.msra.mxu0 %v58
    %132 = vmatpush.msra.mxu0 %v57
    %133 = vmatpush.msra.mxu0 %v56
    %134 = vmatpush.msra.mxu0 %v55
    %135 = vmatpush.msra.mxu0 %v54
    %136 = vmatpush.msra.mxu0 %v53
    %137 = vmatpush.msra.mxu0 %v52
    %138 = vmatpush.msra.mxu0 %v51
    %139 = vmatpush.msra.mxu0 %v50
    %140 = vmatpush.msra.mxu0 %v49
    %141 = vmatmul.f32.gmra.mxu0 %v123
    %v142 = vpop.f32.mrf.mxu0
    %v143 = vadd.f32 0.0, %v142
    %144 = vdwg.mxu0
    %145 = vmatpush.msra.mxu0 %v80
    %146 = vmatpush.msra.mxu0 %v79
    %147 = vmatpush.msra.mxu0 %v78
    %148 = vmatpush.msra.mxu0 %v77
    %149 = vmatpush.msra.mxu0 %v76
    %150 = vmatpush.msra.mxu0 %v75
    %151 = vmatpush.msra.mxu0 %v74
    %152 = vmatpush.msra.mxu0 %v73
    %153 = vmatpush.msra.mxu0 %v72
    %154 = vmatpush.msra.mxu0 %v71
    %155 = vmatpush.msra.mxu0 %v70
    %156 = vmatpush.msra.mxu0 %v69
    %157 = vmatpush.msra.mxu0 %v68
    %158 = vmatpush.msra.mxu0 %v67
    %159 = vmatpush.msra.mxu0 %v66
    %160 = vmatpush.msra.mxu0 %v65
    %161 = vmatmul.f32.gmra.mxu0 %v124
    %v162 = vpop.f32.mrf.mxu0
    %v163 = vadd.f32 %v143, %v162
    %164 = vdwg.mxu0
    %v165 = vlaneseq
    %v166 = vand.u32 %v165, 127
    %vm167 = vcmp.lt.s32.totalorder %v166, 8
    %v168 = vsel %vm167, %v121, %v163
    %v169 = vld [vmem:[#allocation4] sm:$0x1]
    %v170 = vperm.slane %v169, 0
    %v171 = vadd.f32 %v168, %v170
    %v172 = vmul.f32 %v171, 0.2
    %v173 = vmax.f32 %v171, %v172
    %v174 = vld [vmem:[#allocation4 + $0x8] sm:$0xff]
    %v175 = vld [vmem:[#allocation4 + $0x10] sm:$0xff]
    %v176 = vld [vmem:[#allocation4 + $0x18] sm:$0xff]
    %v177 = vld [vmem:[#allocation4 + $0x20] sm:$0xff]
    %v178 = vld [vmem:[#allocation4 + $0x28] sm:$0xff]
    %v179 = vld [vmem:[#allocation4 + $0x30] sm:$0xff]
    %v180 = vld [vmem:[#allocation4 + $0x38] sm:$0xff]
    %v181 = vld [vmem:[#allocation4 + $0x40] sm:$0xff]
    %182 = vmatpush.xpose.msra.mxu0 0.0
    %183 = vmatpush.xpose.msra.mxu0 0.0
    %184 = vmatpush.xpose.msra.mxu0 0.0
    %185 = vmatpush.xpose.msra.mxu0 0.0
    %186 = vmatpush.xpose.msra.mxu0 0.0
    %187 = vmatpush.xpose.msra.mxu0 0.0
    %188 = vmatpush.xpose.msra.mxu0 0.0
    %189 = vmatpush.xpose.msra.mxu0 0.0
    %190 = vmatpush.xpose.msra.mxu0 0.0
    %191 = vmatpush.xpose.msra.mxu0 0.0
    %192 = vmatpush.xpose.msra.mxu0 0.0
    %193 = vmatpush.xpose.msra.mxu0 0.0
    %194 = vmatpush.xpose.msra.mxu0 0.0
    %195 = vmatpush.xpose.msra.mxu0 0.0
    %196 = vmatpush.xpose.msra.mxu0 %v175
    %197 = vmatpush.xpose.msra.mxu0 %v174
    %198 = vmatmul.f32.gmra.mxu0 %v173
    %v199 = vpop.f32.mrf.mxu0
    %v200 = vadd.f32 0.0, %v199
    %201 = vdwg.mxu0
    %v202 = vmul.f32 %v200, 0.2
    %v203 = vmax.f32 %v200, %v202
    %vm204 = vcmask 130048
    %v206 = vsel %vm204, %v203, 0
    %208 = vmatpush.msra.mxu0 0.0
    %209 = vmatpush.msra.mxu0 0.0
    %210 = vmatpush.msra.mxu0 0.0
    %211 = vmatpush.msra.mxu0 0.0
    %212 = vmatpush.msra.mxu0 0.0
    %213 = vmatpush.msra.mxu0 0.0
    %214 = vmatpush.msra.mxu0 0.0
    %215 = vmatpush.msra.mxu0 0.0
    %216 = vmatpush.msra.mxu0 0.0
    %217 = vmatpush.msra.mxu0 0.0
    %218 = vmatpush.msra.mxu0 0.0
    %219 = vmatpush.msra.mxu0 0.0
    %220 = vmatpush.msra.mxu0 0.0
    %221 = vmatpush.msra.mxu0 0.0
    %222 = vmatpush.msra.mxu0 %v177
    %223 = vmatpush.msra.mxu0 %v176
    %224 = vmatmul.f32.gmra.mxu0 %v206
    %v225 = vpop.f32.mrf.mxu0
    %v226 = vadd.f32 0.0, %v225
    %227 = vdwg.mxu0
    %v228 = vmul.f32 %v226, 0.2
    %v229 = vmax.f32 %v226, %v228
    %230 = vmatpush.xpose.msra.mxu0 0.0
    %231 = vmatpush.xpose.msra.mxu0 0.0
    %232 = vmatpush.xpose.msra.mxu0 0.0
    %233 = vmatpush.xpose.msra.mxu0 0.0
    %234 = vmatpush.xpose.msra.mxu0 0.0
    %235 = vmatpush.xpose.msra.mxu0 0.0
    %236 = vmatpush.xpose.msra.mxu0 0.0
    %237 = vmatpush.xpose.msra.mxu0 0.0
    %238 = vmatpush.xpose.msra.mxu0 0.0
    %239 = vmatpush.xpose.msra.mxu0 0.0
    %240 = vmatpush.xpose.msra.mxu0 0.0
    %241 = vmatpush.xpose.msra.mxu0 0.0
    %242 = vmatpush.xpose.msra.mxu0 0.0
    %243 = vmatpush.xpose.msra.mxu0 0.0
    %244 = vmatpush.xpose.msra.mxu0 %v179
    %245 = vmatpush.xpose.msra.mxu0 %v178
    %246 = vmatmul.f32.gmra.mxu0 %v229
    %v247 = vpop.f32.mrf.mxu0
    %v248 = vadd.f32 0.0, %v247
    %249 = vdwg.mxu0
    %v250 = vmul.f32 %v248, 0.2
    %v251 = vmax.f32 %v248, %v250
    %v253 = vsel %vm204, %v251, 0
    %255 = vmatpush.msra.mxu0 0.0
    %256 = vmatpush.msra.mxu0 0.0
    %257 = vmatpush.msra.mxu0 0.0
    %258 = vmatpush.msra.mxu0 0.0
    %259 = vmatpush.msra.mxu0 0.0
    %260 = vmatpush.msra.mxu0 0.0
    %261 = vmatpush.msra.mxu0 0.0
    %262 = vmatpush.msra.mxu0 0.0
    %263 = vmatpush.msra.mxu0 0.0
    %264 = vmatpush.msra.mxu0 0.0
    %265 = vmatpush.msra.mxu0 0.0
    %266 = vmatpush.msra.mxu0 0.0
    %267 = vmatpush.msra.mxu0 0.0
    %268 = vmatpush.msra.mxu0 0.0
    %269 = vmatpush.msra.mxu0 %v181
    %270 = vmatpush.msra.mxu0 %v180
    %271 = vmatmul.f32.gmra.mxu0 %v253
    %v272 = vpop.f32.mrf.mxu0
    %v273 = vadd.f32 0.0, %v272
    %274 = vdwg.mxu0
    %275 = vst [vmem:[%s4] sm:$0xff] %v273
    // Predicated region
    $region26: #{apply.1} parent=1 // pred_check
      _
    $region27: #{apply.1} parent=1 // pred_check_branch
      %277 = sbr.rel (0) target = $region29
    $region28: #{apply.1} parent=1 // pred_region
      _
    $region29: #{apply.1} parent=1 // pred_fallthru
      _
    // Predicated region
    $region30: #{apply.1} parent=1 // pred_check
      _
    $region31: #{apply.1} parent=1 // pred_check_branch
      %279 = sbr.rel (0) target = $region33
    $region32: #{apply.1} parent=1 // pred_region
      _
    $region33: #{apply.1} parent=1 // pred_fallthru
      _
    %280 = vsyncpa [#allocation3], 1
    %281 = vsyncpa [#allocation5], 1

</llo_original>
